<compile_context>
chip_gen: v6e
topology: v6e:2x2x1
jax: 0.10.0
libtpu: 0.0.40
codegen_flags: <defaults>
</compile_context>

<pallas_src>
import functools
import math

import jax
import jax.numpy as jnp
from jax import lax
from jax.experimental import pallas as pl
from jax.experimental.pallas import tpu as pltpu


def fused_resgcn_kernel(x_ref, adj_ref, w_ref, b_ref, out_ref, *, nlayers):
    """Single invocation; the running x is the VMEM-resident f32 output block."""
    out_ref[...] = x_ref[...].astype(jnp.float32)

    def layer(l, carry):
        x = out_ref[...]                                          # (N, C) f32
        # support = x @ W_l   (bf16 MXU inputs, f32 accumulation)
        support = jnp.dot(x.astype(jnp.bfloat16), w_ref[l],
                          preferred_element_type=jnp.float32)     # (N, C) f32
        # out = adj @ support (bf16 MXU inputs, f32 accumulation)
        out = jnp.dot(adj_ref[...], support.astype(jnp.bfloat16),
                      preferred_element_type=jnp.float32)         # (N, C) f32
        out = out + b_ref[l]                                      # (1, C) f32 broadcast
        out_ref[...] = jnp.maximum(out, 0.0) + x                  # relu + residual, f32
        return carry

    lax.fori_loop(0, nlayers, layer, 0, unroll=True)


def res_gcn_block_forward(x_bf16, adj_bf16, weights_bf16, biases_f32,
                          weight_unused=None):
    """ResGCNBlock.forward (inference). `weight_unused` mirrors the ignored torch arg."""
    N, C = x_bf16.shape
    L, c_in, c_out = weights_bf16.shape
    assert c_in == C and c_out == C, "res=True requires in_channels == out_channels"
    assert adj_bf16.shape == (N, N)
    assert biases_f32.shape == (L, 1, C)

    flops = L * (2 * N * C * C + 2 * N * N * C)
    bytes_accessed = (x_bf16.size * x_bf16.dtype.itemsize
                      + adj_bf16.size * adj_bf16.dtype.itemsize
                      + weights_bf16.size * weights_bf16.dtype.itemsize
                      + biases_f32.size * biases_f32.dtype.itemsize
                      + N * C * 4)  # f32 output

    # Everything (x, adj, weight/bias stacks, output) is VMEM-resident for the single
    # fused invocation: set the scoped VMEM limit explicitly with headroom, capped at
    # 64 MiB so the same setting is legal on v7x (64 MiB physical) and v5e/v6e.
    vmem_needed = (2 * N * C          # x bf16
                   + 2 * N * N        # adj bf16
                   + 2 * L * C * C    # weight stack bf16
                   + 4 * L * C        # bias stack f32
                   + 4 * N * C)       # f32 output / running x
    vmem_limit = min(max(4 * vmem_needed, 16 * 1024 * 1024), 64 * 1024 * 1024)

    vspec = pl.BlockSpec(memory_space=pltpu.MemorySpace.VMEM)
    return pl.pallas_call(
        functools.partial(fused_resgcn_kernel, nlayers=L),
        out_shape=jax.ShapeDtypeStruct((N, C), jnp.float32),
        in_specs=[vspec, vspec, vspec, vspec],
        out_specs=vspec,
        compiler_params=pltpu.CompilerParams(vmem_limit_bytes=vmem_limit),
        cost_estimate=pl.CostEstimate(
            flops=flops, transcendentals=0, bytes_accessed=bytes_accessed),
    )(x_bf16, adj_bf16, weights_bf16, biases_f32)


def init_params(key, channels, nlayers):
    """Deterministic init mimicking GraphConvolutionBS.reset_parameters."""
    ws, bs = [], []
    stdv = 1.0 / math.sqrt(channels)
    for _ in range(nlayers):
        key, kw, kb = jax.random.split(key, 3)
        ws.append(jax.random.uniform(kw, (channels, channels), jnp.float32, -stdv, stdv))
        bs.append(jax.random.uniform(kb, (channels,), jnp.float32, -stdv, stdv))
    weights = jnp.stack(ws).astype(jnp.bfloat16)            # (L, C, C) bf16
    biases = jnp.stack(bs).reshape(nlayers, 1, channels)    # (L, 1, C) f32
    return weights, biases


if __name__ == "__main__":
    key = jax.random.PRNGKey(0)
    N = 128       # number of graph nodes (multiple of 8 -> sublane-aligned)
    C = 128       # in_channels == out_channels (res=True); multiple of 128 -> lane-dense
    NLAYERS = 3

    key, kx, ka = jax.random.split(key, 3)
    x_f32 = jax.random.normal(kx, (N, C), jnp.float32)

    # Deterministic dense "sparse-like" adjacency: symmetric mask + self-loops,
    # row-normalized (standard GCN propagation matrix), stored bf16 for DMA.
    # NOTE: bf16 cast means rows no longer sum to exactly 1 (small systematic bias).
    raw = jax.random.uniform(ka, (N, N), jnp.float32)
    mask = (raw + raw.T) > 1.4
    adj_f32 = mask.astype(jnp.float32) + jnp.eye(N, dtype=jnp.float32)
    adj_f32 = adj_f32 / jnp.sum(adj_f32, axis=1, keepdims=True)

    x_bf16 = x_f32.astype(jnp.bfloat16)
    adj_bf16 = adj_f32.astype(jnp.bfloat16)

    weights, biases = init_params(key, C, NLAYERS)

    out = res_gcn_block_forward(x_bf16, adj_bf16, weights, biases, weight_unused=None)
    out = jax.block_until_ready(out)

    # Plain-JAX reference mirroring the kernel's bf16-storage / f32-accumulate scheme.
    ref = x_bf16.astype(jnp.float32)
    for l in range(NLAYERS):
        s = jnp.dot(ref.astype(jnp.bfloat16), weights[l],
                    preferred_element_type=jnp.float32)
        o = jnp.dot(adj_bf16, s.astype(jnp.bfloat16),
                    preferred_element_type=jnp.float32)
        o = o + biases[l]
        ref = jnp.maximum(o, 0.0) + ref

    assert out.shape == (N, C)
    max_err = float(jnp.max(jnp.abs(out - ref)))
    assert jnp.allclose(out, ref, atol=2e-2, rtol=2e-2), max_err

    print("KERNEL_OK")
</pallas_src>

<mosaic_0001>
module attributes {stable_mosaic.version = 11 : i64} {
  func.func @fused_resgcn_kernel(%arg0: memref<128x128xbf16, #tpu.memory_space<vmem>>, %arg1: memref<128x128xbf16, #tpu.memory_space<vmem>>, %arg2: memref<3x128x128xbf16, #tpu.memory_space<vmem>>, %arg3: memref<3x1x128xf32, #tpu.memory_space<vmem>>, %arg4: memref<128x128xf32, #tpu.memory_space<vmem>>) attributes {dimension_semantics = [], scalar_prefetch = 0 : i64, scratch_operands = 0 : i64, tpu.core_type = #tpu.core_type<tc>} {
    %c0 = arith.constant 0 : index
    %c0_0 = arith.constant 0 : index
    %0 = vector.load %arg0[%c0, %c0_0] : memref<128x128xbf16, #tpu.memory_space<vmem>>, vector<128x128xbf16>
    %1 = arith.extf %0 : vector<128x128xbf16> to vector<128x128xf32>
    %c0_1 = arith.constant 0 : index
    %c0_2 = arith.constant 0 : index
    %2 = vector.load %arg4[%c0_1, %c0_2] : memref<128x128xf32, #tpu.memory_space<vmem>>, vector<128x128xf32>
    tpu.vector_store %arg4[%c0_1, %c0_2], %1 {strides = array<i32>} : memref<128x128xf32, #tpu.memory_space<vmem>>, vector<128x128xf32>,
    %c0_i32 = arith.constant 0 : i32
    %c0_3 = arith.constant 0 : index
    %c0_4 = arith.constant 0 : index
    %3 = vector.load %arg4[%c0_3, %c0_4] : memref<128x128xf32, #tpu.memory_space<vmem>>, vector<128x128xf32>
    %4 = arith.truncf %3 : vector<128x128xf32> to vector<128x128xbf16>
    %5 = arith.index_cast %c0_i32 : i32 to index
    %c0_5 = arith.constant 0 : index
    %c0_6 = arith.constant 0 : index
    %6 = vector.load %arg2[%5, %c0_5, %c0_6] : memref<3x128x128xbf16, #tpu.memory_space<vmem>>, vector<1x128x128xbf16>
    %7 = vector.shape_cast %6 : vector<1x128x128xbf16> to vector<128x128xbf16>
    %cst = arith.constant dense<0.000000e+00> : vector<128x128xf32>
    %8 = tpu.matmul %4, %7, %cst {dimension_numbers = #tpu.dot_dimension_numbers<[1], [0], [0], [1], [0, 0, 1, 1], [], []>} : vector<128x128xbf16>, vector<128x128xbf16>, vector<128x128xf32> -> vector<128x128xf32>
    %c0_7 = arith.constant 0 : index
    %c0_8 = arith.constant 0 : index
    %9 = vector.load %arg1[%c0_7, %c0_8] : memref<128x128xbf16, #tpu.memory_space<vmem>>, vector<128x128xbf16>
    %10 = arith.truncf %8 : vector<128x128xf32> to vector<128x128xbf16>
    %cst_9 = arith.constant dense<0.000000e+00> : vector<128x128xf32>
    %11 = tpu.matmul %9, %10, %cst_9 {dimension_numbers = #tpu.dot_dimension_numbers<[1], [0], [0], [1], [0, 0, 1, 1], [], []>} : vector<128x128xbf16>, vector<128x128xbf16>, vector<128x128xf32> -> vector<128x128xf32>
    %12 = arith.index_cast %c0_i32 : i32 to index
    %c0_10 = arith.constant 0 : index
    %c0_11 = arith.constant 0 : index
    %13 = vector.load %arg3[%12, %c0_10, %c0_11] : memref<3x1x128xf32, #tpu.memory_space<vmem>>, vector<1x1x128xf32>
    %14 = vector.shape_cast %13 : vector<1x1x128xf32> to vector<1x128xf32>
    %15 = vector.broadcast %14 : vector<1x128xf32> to vector<128x128xf32>
    %16 = arith.addf %11, %15 : vector<128x128xf32>
    %cst_12 = arith.constant 0.000000e+00 : f32
    %17 = vector.broadcast %cst_12 : f32 to vector<128x128xf32>
    %18 = arith.maximumf %16, %17 : vector<128x128xf32>
    %19 = arith.addf %18, %3 : vector<128x128xf32>
    %c0_13 = arith.constant 0 : index
    %c0_14 = arith.constant 0 : index
    %20 = vector.load %arg4[%c0_13, %c0_14] : memref<128x128xf32, #tpu.memory_space<vmem>>, vector<128x128xf32>
    tpu.vector_store %arg4[%c0_13, %c0_14], %19 {strides = array<i32>} : memref<128x128xf32, #tpu.memory_space<vmem>>, vector<128x128xf32>,
    %c1_i32 = arith.constant 1 : i32
    %c0_15 = arith.constant 0 : index
    %c0_16 = arith.constant 0 : index
    %21 = vector.load %arg4[%c0_15, %c0_16] : memref<128x128xf32, #tpu.memory_space<vmem>>, vector<128x128xf32>
    %22 = arith.truncf %21 : vector<128x128xf32> to vector<128x128xbf16>
    %23 = arith.index_cast %c1_i32 : i32 to index
    %c0_17 = arith.constant 0 : index
    %c0_18 = arith.constant 0 : index
    %24 = vector.load %arg2[%23, %c0_17, %c0_18] : memref<3x128x128xbf16, #tpu.memory_space<vmem>>, vector<1x128x128xbf16>
    %25 = vector.shape_cast %24 : vector<1x128x128xbf16> to vector<128x128xbf16>
    %cst_19 = arith.constant dense<0.000000e+00> : vector<128x128xf32>
    %26 = tpu.matmul %22, %25, %cst_19 {dimension_numbers = #tpu.dot_dimension_numbers<[1], [0], [0], [1], [0, 0, 1, 1], [], []>} : vector<128x128xbf16>, vector<128x128xbf16>, vector<128x128xf32> -> vector<128x128xf32>
    %c0_20 = arith.constant 0 : index
    %c0_21 = arith.constant 0 : index
    %27 = vector.load %arg1[%c0_20, %c0_21] : memref<128x128xbf16, #tpu.memory_space<vmem>>, vector<128x128xbf16>
    %28 = arith.truncf %26 : vector<128x128xf32> to vector<128x128xbf16>
    %cst_22 = arith.constant dense<0.000000e+00> : vector<128x128xf32>
    %29 = tpu.matmul %27, %28, %cst_22 {dimension_numbers = #tpu.dot_dimension_numbers<[1], [0], [0], [1], [0, 0, 1, 1], [], []>} : vector<128x128xbf16>, vector<128x128xbf16>, vector<128x128xf32> -> vector<128x128xf32>
    %30 = arith.index_cast %c1_i32 : i32 to index
    %c0_23 = arith.constant 0 : index
    %c0_24 = arith.constant 0 : index
    %31 = vector.load %arg3[%30, %c0_23, %c0_24] : memref<3x1x128xf32, #tpu.memory_space<vmem>>, vector<1x1x128xf32>
    %32 = vector.shape_cast %31 : vector<1x1x128xf32> to vector<1x128xf32>
    %33 = vector.broadcast %32 : vector<1x128xf32> to vector<128x128xf32>
    %34 = arith.addf %29, %33 : vector<128x128xf32>
    %cst_25 = arith.constant 0.000000e+00 : f32
    %35 = vector.broadcast %cst_25 : f32 to vector<128x128xf32>
    %36 = arith.maximumf %34, %35 : vector<128x128xf32>
    %37 = arith.addf %36, %21 : vector<128x128xf32>
    %c0_26 = arith.constant 0 : index
    %c0_27 = arith.constant 0 : index
    %38 = vector.load %arg4[%c0_26, %c0_27] : memref<128x128xf32, #tpu.memory_space<vmem>>, vector<128x128xf32>
    tpu.vector_store %arg4[%c0_26, %c0_27], %37 {strides = array<i32>} : memref<128x128xf32, #tpu.memory_space<vmem>>, vector<128x128xf32>,
    %c2_i32 = arith.constant 2 : i32
    %c0_28 = arith.constant 0 : index
    %c0_29 = arith.constant 0 : index
    %39 = vector.load %arg4[%c0_28, %c0_29] : memref<128x128xf32, #tpu.memory_space<vmem>>, vector<128x128xf32>
    %40 = arith.truncf %39 : vector<128x128xf32> to vector<128x128xbf16>
    %41 = arith.index_cast %c2_i32 : i32 to index
    %c0_30 = arith.constant 0 : index
    %c0_31 = arith.constant 0 : index
    %42 = vector.load %arg2[%41, %c0_30, %c0_31] : memref<3x128x128xbf16, #tpu.memory_space<vmem>>, vector<1x128x128xbf16>
    %43 = vector.shape_cast %42 : vector<1x128x128xbf16> to vector<128x128xbf16>
    %cst_32 = arith.constant dense<0.000000e+00> : vector<128x128xf32>
    %44 = tpu.matmul %40, %43, %cst_32 {dimension_numbers = #tpu.dot_dimension_numbers<[1], [0], [0], [1], [0, 0, 1, 1], [], []>} : vector<128x128xbf16>, vector<128x128xbf16>, vector<128x128xf32> -> vector<128x128xf32>
    %c0_33 = arith.constant 0 : index
    %c0_34 = arith.constant 0 : index
    %45 = vector.load %arg1[%c0_33, %c0_34] : memref<128x128xbf16, #tpu.memory_space<vmem>>, vector<128x128xbf16>
    %46 = arith.truncf %44 : vector<128x128xf32> to vector<128x128xbf16>
    %cst_35 = arith.constant dense<0.000000e+00> : vector<128x128xf32>
    %47 = tpu.matmul %45, %46, %cst_35 {dimension_numbers = #tpu.dot_dimension_numbers<[1], [0], [0], [1], [0, 0, 1, 1], [], []>} : vector<128x128xbf16>, vector<128x128xbf16>, vector<128x128xf32> -> vector<128x128xf32>
    %48 = arith.index_cast %c2_i32 : i32 to index
    %c0_36 = arith.constant 0 : index
    %c0_37 = arith.constant 0 : index
    %49 = vector.load %arg3[%48, %c0_36, %c0_37] : memref<3x1x128xf32, #tpu.memory_space<vmem>>, vector<1x1x128xf32>
    %50 = vector.shape_cast %49 : vector<1x1x128xf32> to vector<1x128xf32>
    %51 = vector.broadcast %50 : vector<1x128xf32> to vector<128x128xf32>
    %52 = arith.addf %47, %51 : vector<128x128xf32>
    %cst_38 = arith.constant 0.000000e+00 : f32
    %53 = vector.broadcast %cst_38 : f32 to vector<128x128xf32>
    %54 = arith.maximumf %52, %53 : vector<128x128xf32>
    %55 = arith.addf %54, %39 : vector<128x128xf32>
    %c0_39 = arith.constant 0 : index
    %c0_40 = arith.constant 0 : index
    %56 = vector.load %arg4[%c0_39, %c0_40] : memref<128x128xf32, #tpu.memory_space<vmem>>, vector<128x128xf32>
    tpu.vector_store %arg4[%c0_39, %c0_40], %55 {strides = array<i32>} : memref<128x128xf32, #tpu.memory_space<vmem>>, vector<128x128xf32>,
    %c3_i32 = arith.constant 3 : i32
    return
  }
}

</mosaic_0001>

<llo_original>
// kernel: tpu_custom_call.1
$region0: #{tpu_custom_call.1}
  #allocation0 [shape = 'u32[]', space=smem, size = 0x4, offset = 0x4, fixed_abs, tag = 'smem constant byte address 0x4 - core index']
  #allocation1 [shape = 'u32[144,128]{1,0:T(1,128)}', space=vmem, size = 0x12000, scoped, tag = 'internal scratch']
  %s0 = inlined_call_operand.hbm [shape: bf16[128,128], index: 0, kind: input, shape index: {}]
  %s1 = inlined_call_operand.hbm [shape: bf16[128,128], index: 1, kind: input, shape index: {}]
  %s2 = inlined_call_operand.hbm [shape: bf16[3,128,128], index: 2, kind: input, shape index: {}]
  %s3 = inlined_call_operand.vmem [shape: f32[3,1,128], index: 3, kind: input, shape index: {}]
  %s4 = inlined_call_operand.hbm [shape: f32[128,128], index: 4, kind: output, shape index: {}]
  %s5 = sld [smem:[#allocation0]]
  $region38: #{tpu_custom_call.1} parent=0
    _
  %s7 = ssub.s32 1, %s5
  %s8 = scalar_select 0, %s7, %s5
  $region1: #{tpu_custom_call.1} parent=0
    #allocation2 [shape = 'u8[32768]{0}', space=vmem, size = 0x8000, scoped, tag = 'input window, operand 0, single buffered']
    #allocation3 [shape = 's32[1]{0}', space=sflag, size = 0x4, scoped, tag = 'scoped memory for tpu_custom_call.1']
    #allocation4 [shape = 's32[1]{0}', space=sflag, size = 0x4, scoped, tag = 'scoped memory for tpu_custom_call.1']
    #allocation5 [shape = 'u8[32768]{0}', space=vmem, size = 0x8000, scoped, tag = 'input window, operand 1, single buffered']
    #allocation6 [shape = 's32[1]{0}', space=sflag, size = 0x4, scoped, tag = 'scoped memory for tpu_custom_call.1']
    #allocation7 [shape = 'u8[98304]{0}', space=vmem, size = 0x18000, scoped, tag = 'input window, operand 2, single buffered']
    #allocation8 [shape = 'u8[65536]{0}', space=vmem, size = 0x10000, scoped, tag = 'output window, operand 0, single buffered']
    %9 = vsyncpa [#allocation3], 0
    %10 = vsyncpa [#allocation6], 0
    %11 = vsyncpa [#allocation4], 0
    // Predicated region
    $region2: #{tpu_custom_call.1} parent=1 // pred_check
      _
    $region3: #{tpu_custom_call.1} parent=1 // pred_check_branch
      %13 = sbr.rel (0) target = $region5
    $region4: #{tpu_custom_call.1} parent=1 // pred_region
      %s15 = ssub.s32 1024, 1024
      %16 = vsyncadd [#allocation3], %s15
      %s17 = sshll.u32 [#allocation2], 4
      %s18 = int_to_ptr.vmem [resolvable:$true] %s17
      %23 = dma.hbm_to_vmem [thread:$0]  %s0, 1024, %s18, [#allocation3], 64, 64, 4
    $region5: #{tpu_custom_call.1} parent=1 // pred_fallthru
      _
    // Predicated region
    $region6: #{tpu_custom_call.1} parent=1 // pred_check
      _
    $region7: #{tpu_custom_call.1} parent=1 // pred_check_branch
      %25 = sbr.rel (0) target = $region9
    $region8: #{tpu_custom_call.1} parent=1 // pred_region
      %s27 = ssub.s32 1024, 1024
      %28 = vsyncadd [#allocation6], %s27
      %s29 = sshll.u32 [#allocation5], 4
      %s30 = int_to_ptr.vmem [resolvable:$true] %s29
      %35 = dma.hbm_to_vmem [thread:$0]  %s1, 1024, %s30, [#allocation6], 64, 64, 4
    $region9: #{tpu_custom_call.1} parent=1 // pred_fallthru
      _
    // Predicated region
    $region10: #{tpu_custom_call.1} parent=1 // pred_check
      _
    $region11: #{tpu_custom_call.1} parent=1 // pred_check_branch
      %37 = sbr.rel (0) target = $region13
    $region12: #{tpu_custom_call.1} parent=1 // pred_region
      %s39 = ssub.s32 3072, 3072
      %40 = vsyncadd [#allocation6], %s39
      %s41 = sshll.u32 [#allocation7], 4
      %s42 = int_to_ptr.vmem [resolvable:$true] %s41
      %47 = dma.hbm_to_vmem [thread:$0]  %s2, 3072, %s42, [#allocation6], 64, 64, 4
    $region13: #{tpu_custom_call.1} parent=1 // pred_fallthru
      _
    // Predicated region
    $region14: #{tpu_custom_call.1} parent=1 // pred_check
      _
    $region15: #{tpu_custom_call.1} parent=1 // pred_check_branch
      %49 = sbr.rel (0) target = $region17
    $region16: #{tpu_custom_call.1} parent=1 // pred_region
      _
    $region17: #{tpu_custom_call.1} parent=1 // pred_fallthru
      _
    // Predicated region
    $region18: #{tpu_custom_call.1} parent=1 // pred_check
      _
    $region19: #{tpu_custom_call.1} parent=1 // pred_check_branch
      %51 = sbr.rel (0) target = $region21
    $region20: #{tpu_custom_call.1} parent=1 // pred_region
      %52 = dma.done [#allocation3], 1024
    $region21: #{tpu_custom_call.1} parent=1 // pred_fallthru
      _
    // Predicated region
    $region22: #{tpu_custom_call.1} parent=1 // pred_check
      _
    $region23: #{tpu_custom_call.1} parent=1 // pred_check_branch
      %54 = sbr.rel (0) target = $region25
    $region24: #{tpu_custom_call.1} parent=1 // pred_region
      %55 = dma.done [#allocation6], 1024
    $region25: #{tpu_custom_call.1} parent=1 // pred_fallthru
      _
    // Predicated region
    $region26: #{tpu_custom_call.1} parent=1 // pred_check
      _
    $region27: #{tpu_custom_call.1} parent=1 // pred_check_branch
      %57 = sbr.rel (0) target = $region29
    $region28: #{tpu_custom_call.1} parent=1 // pred_region
      %58 = dma.done [#allocation6], 3072
    $region29: #{tpu_custom_call.1} parent=1 // pred_fallthru
      _
    %v60 = vld [vmem:[#allocation2] sm:$0xf]
    %v61 = vld [vmem:[#allocation2 + $0x4] sm:$0xf]
    %v62 = vld [vmem:[#allocation2 + $0x8] sm:$0xf]
    %v63 = vld [vmem:[#allocation2 + $0xc] sm:$0xf]
    %v64 = vld [vmem:[#allocation2 + $0x10] sm:$0xf]
    %v65 = vld [vmem:[#allocation2 + $0x14] sm:$0xf]
    %v66 = vld [vmem:[#allocation2 + $0x18] sm:$0xf]
    %v67 = vld [vmem:[#allocation2 + $0x1c] sm:$0xf]
    %v68 = vld [vmem:[#allocation2 + $0x20] sm:$0xf]
    %v69 = vld [vmem:[#allocation2 + $0x24] sm:$0xf]
    %v70 = vld [vmem:[#allocation2 + $0x28] sm:$0xf]
    %v71 = vld [vmem:[#allocation2 + $0x2c] sm:$0xf]
    %v72 = vld [vmem:[#allocation2 + $0x30] sm:$0xf]
    %v73 = vld [vmem:[#allocation2 + $0x34] sm:$0xf]
    %v74 = vld [vmem:[#allocation2 + $0x38] sm:$0xf]
    %v75 = vld [vmem:[#allocation2 + $0x3c] sm:$0xf]
    %v76 = vunpack.c.l.bf16 %v60
    %v77 = vunpack.c.l.bf16 %v61
    %v78 = vunpack.c.l.bf16 %v62
    %v79 = vunpack.c.l.bf16 %v63
    %v80 = vunpack.c.l.bf16 %v64
    %v81 = vunpack.c.l.bf16 %v65
    %v82 = vunpack.c.l.bf16 %v66
    %v83 = vunpack.c.l.bf16 %v67
    %v84 = vunpack.c.l.bf16 %v68
    %v85 = vunpack.c.l.bf16 %v69
    %v86 = vunpack.c.l.bf16 %v70
    %v87 = vunpack.c.l.bf16 %v71
    %v88 = vunpack.c.l.bf16 %v72
    %v89 = vunpack.c.l.bf16 %v73
    %v90 = vunpack.c.l.bf16 %v74
    %v91 = vunpack.c.l.bf16 %v75
    %92 = vst [vmem:[#allocation8] sm:$0xff] %v76
    %93 = vst [vmem:[#allocation8 + $0x8] sm:$0xff] %v77
    %94 = vst [vmem:[#allocation8 + $0x10] sm:$0xff] %v78
    %95 = vst [vmem:[#allocation8 + $0x18] sm:$0xff] %v79
    %96 = vst [vmem:[#allocation8 + $0x20] sm:$0xff] %v80
    %97 = vst [vmem:[#allocation8 + $0x28] sm:$0xff] %v81
    %98 = vst [vmem:[#allocation8 + $0x30] sm:$0xff] %v82
    %99 = vst [vmem:[#allocation8 + $0x38] sm:$0xff] %v83
    %100 = vst [vmem:[#allocation8 + $0x40] sm:$0xff] %v84
    %101 = vst [vmem:[#allocation8 + $0x48] sm:$0xff] %v85
    %102 = vst [vmem:[#allocation8 + $0x50] sm:$0xff] %v86
    %103 = vst [vmem:[#allocation8 + $0x58] sm:$0xff] %v87
    %104 = vst [vmem:[#allocation8 + $0x60] sm:$0xff] %v88
    %105 = vst [vmem:[#allocation8 + $0x68] sm:$0xff] %v89
    %106 = vst [vmem:[#allocation8 + $0x70] sm:$0xff] %v90
    %107 = vst [vmem:[#allocation8 + $0x78] sm:$0xff] %v91
    %v108 = vld [vmem:[#allocation8] sm:$0xff]
    %v109 = vld [vmem:[#allocation8 + $0x8] sm:$0xff]
    %v110 = vld [vmem:[#allocation8 + $0x10] sm:$0xff]
    %v111 = vld [vmem:[#allocation8 + $0x18] sm:$0xff]
    %v112 = vld [vmem:[#allocation8 + $0x20] sm:$0xff]
    %v113 = vld [vmem:[#allocation8 + $0x28] sm:$0xff]
    %v114 = vld [vmem:[#allocation8 + $0x30] sm:$0xff]
    %v115 = vld [vmem:[#allocation8 + $0x38] sm:$0xff]
    %v116 = vld [vmem:[#allocation8 + $0x40] sm:$0xff]
    %v117 = vld [vmem:[#allocation8 + $0x48] sm:$0xff]
    %v118 = vld [vmem:[#allocation8 + $0x50] sm:$0xff]
    %v119 = vld [vmem:[#allocation8 + $0x58] sm:$0xff]
    %v120 = vld [vmem:[#allocation8 + $0x60] sm:$0xff]
    %v121 = vld [vmem:[#allocation8 + $0x68] sm:$0xff]
    %v122 = vld [vmem:[#allocation8 + $0x70] sm:$0xff]
    %v123 = vld [vmem:[#allocation8 + $0x78] sm:$0xff]
    %v124 = vpack.c.bf16 %v109, %v108
    %v125 = vpack.c.bf16 %v111, %v110
    %v126 = vpack.c.bf16 %v113, %v112
    %v127 = vpack.c.bf16 %v115, %v114
    %v128 = vpack.c.bf16 %v117, %v116
    %v129 = vpack.c.bf16 %v119, %v118
    %v130 = vpack.c.bf16 %v121, %v120
    %v131 = vpack.c.bf16 %v123, %v122
    %v132 = vld [vmem:[#allocation7] sm:$0xf]
    %v133 = vld [vmem:[#allocation7 + $0x4] sm:$0xf]
    %v134 = vld [vmem:[#allocation7 + $0x8] sm:$0xf]
    %v135 = vld [vmem:[#allocation7 + $0xc] sm:$0xf]
    %v136 = vld [vmem:[#allocation7 + $0x10] sm:$0xf]
    %v137 = vld [vmem:[#allocation7 + $0x14] sm:$0xf]
    %v138 = vld [vmem:[#allocation7 + $0x18] sm:$0xf]
    %v139 = vld [vmem:[#allocation7 + $0x1c] sm:$0xf]
    %v140 = vld [vmem:[#allocation7 + $0x20] sm:$0xf]
    %v141 = vld [vmem:[#allocation7 + $0x24] sm:$0xf]
    %v142 = vld [vmem:[#allocation7 + $0x28] sm:$0xf]
    %v143 = vld [vmem:[#allocation7 + $0x2c] sm:$0xf]
    %v144 = vld [vmem:[#allocation7 + $0x30] sm:$0xf]
    %v145 = vld [vmem:[#allocation7 + $0x34] sm:$0xf]
    %v146 = vld [vmem:[#allocation7 + $0x38] sm:$0xf]
    %v147 = vld [vmem:[#allocation7 + $0x3c] sm:$0xf]
    %v164 = vunpack.c.l.b16 %v132
    %v165 = vunpack.c.l.b16 %v133
    %v166 = vunpack.c.l.b16 %v134
    %v167 = vunpack.c.l.b16 %v135
    %v168 = vunpack.c.l.b16 %v136
    %v169 = vunpack.c.l.b16 %v137
    %v170 = vunpack.c.l.b16 %v138
    %v171 = vunpack.c.l.b16 %v139
    %v172 = vunpack.c.l.b16 %v140
    %v173 = vunpack.c.l.b16 %v141
    %v174 = vunpack.c.l.b16 %v142
    %v175 = vunpack.c.l.b16 %v143
    %v176 = vunpack.c.l.b16 %v144
    %v177 = vunpack.c.l.b16 %v145
    %v178 = vunpack.c.l.b16 %v146
    %v179 = vunpack.c.l.b16 %v147
    %v180 = vpack.c.b16 %v165, %v164
    %v181 = vpack.c.b16 %v167, %v166
    %v182 = vpack.c.b16 %v169, %v168
    %v183 = vpack.c.b16 %v171, %v170
    %v184 = vpack.c.b16 %v173, %v172
    %v185 = vpack.c.b16 %v175, %v174
    %v186 = vpack.c.b16 %v177, %v176
    %v187 = vpack.c.b16 %v179, %v178
    %196 = vmatprep.subr.bf16.mxu0 0
    %197 = vmatpush1.bf16.msra.mxu0 %v187
    %198 = vmatprep.subr.bf16.mxu0 0
    %199 = vmatpush1.bf16.msra.mxu0 %v186
    %200 = vmatprep.subr.bf16.mxu0 0
    %201 = vmatpush1.bf16.msra.mxu0 %v185
    %202 = vmatprep.subr.bf16.mxu0 0
    %203 = vmatpush1.bf16.msra.mxu0 %v184
    %204 = vmatprep.subr.bf16.mxu0 0
    %205 = vmatpush1.bf16.msra.mxu0 %v183
    %206 = vmatprep.subr.bf16.mxu0 0
    %207 = vmatpush1.bf16.msra.mxu0 %v182
    %208 = vmatprep.subr.bf16.mxu0 0
    %209 = vmatpush1.bf16.msra.mxu0 %v181
    %210 = vmatprep.subr.bf16.mxu0 0
    %211 = vmatpush1.bf16.msra.mxu0 %v180
    %212 = vmatprep.subr.bf16.mxu0 0
    %213 = vmatpush2.bf16.msra.mxu0 0
    %214 = vmatprep.subr.bf16.mxu0 0
    %215 = vmatpush2.bf16.msra.mxu0 0
    %216 = vmatprep.subr.bf16.mxu0 0
    %217 = vmatpush2.bf16.msra.mxu0 0
    %218 = vmatprep.subr.bf16.mxu0 0
    %219 = vmatpush2.bf16.msra.mxu0 0
    %220 = vmatprep.subr.bf16.mxu0 0
    %221 = vmatpush2.bf16.msra.mxu0 0
    %222 = vmatprep.subr.bf16.mxu0 0
    %223 = vmatpush2.bf16.msra.mxu0 0
    %224 = vmatprep.subr.bf16.mxu0 0
    %225 = vmatpush2.bf16.msra.mxu0 0
    %226 = vmatprep.subr.bf16.mxu0 0
    %227 = vmatpush2.bf16.msra.mxu0 0
    %228 = vmatprep.mubr.bf16.mxu0 0
    %229 = vmatmul.mubr.bf16.gmra.mxu0 %v124
    %v230 = vpop.f32.mrf.mxu0
    %v231 = vadd.f32 0.0, %v230
    %v232 = vpop.f32.mrf.mxu0
    %v233 = vpop.f32.mrf.mxu0
    %v234 = vadd.f32 0.0, %v233
    %v235 = vpop.f32.mrf.mxu0
    %236 = vmatprep.mubr.bf16.mxu0 0
    %237 = vmatmul.mubr.bf16.gmra.mxu0 %v125
    %v238 = vpop.f32.mrf.mxu0
    %v239 = vadd.f32 0.0, %v238
    %v240 = vpop.f32.mrf.mxu0
    %v241 = vpop.f32.mrf.mxu0
    %v242 = vadd.f32 0.0, %v241
    %v243 = vpop.f32.mrf.mxu0
    %244 = vmatprep.mubr.bf16.mxu0 0
    %245 = vmatmul.mubr.bf16.gmra.mxu0 %v126
    %v246 = vpop.f32.mrf.mxu0
    %v247 = vadd.f32 0.0, %v246
    %v248 = vpop.f32.mrf.mxu0
    %v249 = vpop.f32.mrf.mxu0
    %v250 = vadd.f32 0.0, %v249
    %v251 = vpop.f32.mrf.mxu0
    %252 = vmatprep.mubr.bf16.mxu0 0
    %253 = vmatmul.mubr.bf16.gmra.mxu0 %v127
    %v254 = vpop.f32.mrf.mxu0
    %v255 = vadd.f32 0.0, %v254
    %v256 = vpop.f32.mrf.mxu0
    %v257 = vpop.f32.mrf.mxu0
    %v258 = vadd.f32 0.0, %v257
    %v259 = vpop.f32.mrf.mxu0
    %260 = vmatprep.mubr.bf16.mxu0 0
    %261 = vmatmul.mubr.bf16.gmra.mxu0 %v128
    %v262 = vpop.f32.mrf.mxu0
    %v263 = vadd.f32 0.0, %v262
    %v264 = vpop.f32.mrf.mxu0
    %v265 = vpop.f32.mrf.mxu0
    %v266 = vadd.f32 0.0, %v265
    %v267 = vpop.f32.mrf.mxu0
    %268 = vmatprep.mubr.bf16.mxu0 0
    %269 = vmatmul.mubr.bf16.gmra.mxu0 %v129
    %v270 = vpop.f32.mrf.mxu0
    %v271 = vadd.f32 0.0, %v270
    %v272 = vpop.f32.mrf.mxu0
    %v273 = vpop.f32.mrf.mxu0
    %v274 = vadd.f32 0.0, %v273
    %v275 = vpop.f32.mrf.mxu0
    %276 = vmatprep.mubr.bf16.mxu0 0
    %277 = vmatmul.mubr.bf16.gmra.mxu0 %v130
    %v278 = vpop.f32.mrf.mxu0
    %v279 = vadd.f32 0.0, %v278
    %v280 = vpop.f32.mrf.mxu0
    %v281 = vpop.f32.mrf.mxu0
    %v282 = vadd.f32 0.0, %v281
    %v283 = vpop.f32.mrf.mxu0
    %284 = vmatprep.mubr.bf16.mxu0 0
    %285 = vmatmul.mubr.bf16.gmra.mxu0 %v131
    %v286 = vpop.f32.mrf.mxu0
    %v287 = vadd.f32 0.0, %v286
    %v288 = vpop.f32.mrf.mxu0
    %v289 = vpop.f32.mrf.mxu0
    %v290 = vadd.f32 0.0, %v289
    %v291 = vpop.f32.mrf.mxu0
    %292 = vdwg.mxu0
    %v293 = vld [vmem:[#allocation5] sm:$0xf]
    %v294 = vld [vmem:[#allocation5 + $0x4] sm:$0xf]
    %v295 = vld [vmem:[#allocation5 + $0x8] sm:$0xf]
    %v296 = vld [vmem:[#allocation5 + $0xc] sm:$0xf]
    %v297 = vld [vmem:[#allocation5 + $0x10] sm:$0xf]
    %v298 = vld [vmem:[#allocation5 + $0x14] sm:$0xf]
    %v299 = vld [vmem:[#allocation5 + $0x18] sm:$0xf]
    %v300 = vld [vmem:[#allocation5 + $0x1c] sm:$0xf]
    %v301 = vld [vmem:[#allocation5 + $0x20] sm:$0xf]
    %v302 = vld [vmem:[#allocation5 + $0x24] sm:$0xf]
    %v303 = vld [vmem:[#allocation5 + $0x28] sm:$0xf]
    %v304 = vld [vmem:[#allocation5 + $0x2c] sm:$0xf]
    %v305 = vld [vmem:[#allocation5 + $0x30] sm:$0xf]
    %v306 = vld [vmem:[#allocation5 + $0x34] sm:$0xf]
    %v307 = vld [vmem:[#allocation5 + $0x38] sm:$0xf]
    %v308 = vld [vmem:[#allocation5 + $0x3c] sm:$0xf]
    %v309 = vpack.c.bf16 %v234, %v231
    %v310 = vpack.c.bf16 %v242, %v239
    %v311 = vpack.c.bf16 %v250, %v247
    %v312 = vpack.c.bf16 %v258, %v255
    %v313 = vpack.c.bf16 %v266, %v263
    %v314 = vpack.c.bf16 %v274, %v271
    %v315 = vpack.c.bf16 %v282, %v279
    %v316 = vpack.c.bf16 %v290, %v287
    %v317 = vld [vmem:[%s3] sm:$0x1]
    %v319 = vlaneseq
    %v320 = vshrl.u32 %v319, 7
    %v321 = vsub.s32 0, %v320
    %v322 = vrot.slane %v317, %v321
    %v340 = vunpack.c.l.b16 %v293
    %v341 = vunpack.c.l.b16 %v294
    %v342 = vunpack.c.l.b16 %v295
    %v343 = vunpack.c.l.b16 %v296
    %v344 = vunpack.c.l.b16 %v297
    %v345 = vunpack.c.l.b16 %v298
    %v346 = vunpack.c.l.b16 %v299
    %v347 = vunpack.c.l.b16 %v300
    %v348 = vunpack.c.l.b16 %v301
    %v349 = vunpack.c.l.b16 %v302
    %v350 = vunpack.c.l.b16 %v303
    %v351 = vunpack.c.l.b16 %v304
    %v352 = vunpack.c.l.b16 %v305
    %v353 = vunpack.c.l.b16 %v306
    %v354 = vunpack.c.l.b16 %v307
    %v355 = vunpack.c.l.b16 %v308
    %v356 = vpack.c.b16 %v341, %v340
    %v357 = vpack.c.b16 %v343, %v342
    %v358 = vpack.c.b16 %v345, %v344
    %v359 = vpack.c.b16 %v347, %v346
    %v360 = vpack.c.b16 %v349, %v348
    %v361 = vpack.c.b16 %v351, %v350
    %v362 = vpack.c.b16 %v353, %v352
    %v363 = vpack.c.b16 %v355, %v354
    %372 = vmatprep.subr.bf16.mxu0 0
    %373 = vmatpush1.bf16.msra.mxu0 %v316
    %374 = vmatprep.subr.bf16.mxu0 0
    %375 = vmatpush1.bf16.msra.mxu0 %v315
    %376 = vmatprep.subr.bf16.mxu0 0
    %377 = vmatpush1.bf16.msra.mxu0 %v314
    %378 = vmatprep.subr.bf16.mxu0 0
    %379 = vmatpush1.bf16.msra.mxu0 %v313
    %380 = vmatprep.subr.bf16.mxu0 0
    %381 = vmatpush1.bf16.msra.mxu0 %v312
    %382 = vmatprep.subr.bf16.mxu0 0
    %383 = vmatpush1.bf16.msra.mxu0 %v311
    %384 = vmatprep.subr.bf16.mxu0 0
    %385 = vmatpush1.bf16.msra.mxu0 %v310
    %386 = vmatprep.subr.bf16.mxu0 0
    %387 = vmatpush1.bf16.msra.mxu0 %v309
    %388 = vmatprep.subr.bf16.mxu0 0
    %389 = vmatpush2.bf16.msra.mxu0 0
    %390 = vmatprep.subr.bf16.mxu0 0
    %391 = vmatpush2.bf16.msra.mxu0 0
    %392 = vmatprep.subr.bf16.mxu0 0
    %393 = vmatpush2.bf16.msra.mxu0 0
    %394 = vmatprep.subr.bf16.mxu0 0
    %395 = vmatpush2.bf16.msra.mxu0 0
    %396 = vmatprep.subr.bf16.mxu0 0
    %397 = vmatpush2.bf16.msra.mxu0 0
    %398 = vmatprep.subr.bf16.mxu0 0
    %399 = vmatpush2.bf16.msra.mxu0 0
    %400 = vmatprep.subr.bf16.mxu0 0
    %401 = vmatpush2.bf16.msra.mxu0 0
    %402 = vmatprep.subr.bf16.mxu0 0
    %403 = vmatpush2.bf16.msra.mxu0 0
    %404 = vmatprep.mubr.bf16.mxu0 0
    %405 = vmatmul.mubr.bf16.gmra.mxu0 %v356
    %v406 = vpop.f32.mrf.mxu0
    %v407 = vadd.f32 %v322, %v406
    %v408 = vpop.f32.mrf.mxu0
    %v409 = vpop.f32.mrf.mxu0
    %v410 = vadd.f32 %v322, %v409
    %v411 = vpop.f32.mrf.mxu0
    %412 = vmatprep.mubr.bf16.mxu0 0
    %413 = vmatmul.mubr.bf16.gmra.mxu0 %v357
    %v414 = vpop.f32.mrf.mxu0
    %v415 = vadd.f32 %v322, %v414
    %v416 = vpop.f32.mrf.mxu0
    %v417 = vpop.f32.mrf.mxu0
    %v418 = vadd.f32 %v322, %v417
    %v419 = vpop.f32.mrf.mxu0
    %420 = vmatprep.mubr.bf16.mxu0 0
    %421 = vmatmul.mubr.bf16.gmra.mxu0 %v358
    %v422 = vpop.f32.mrf.mxu0
    %v423 = vadd.f32 %v322, %v422
    %v424 = vpop.f32.mrf.mxu0
    %v425 = vpop.f32.mrf.mxu0
    %v426 = vadd.f32 %v322, %v425
    %v427 = vpop.f32.mrf.mxu0
    %428 = vmatprep.mubr.bf16.mxu0 0
    %429 = vmatmul.mubr.bf16.gmra.mxu0 %v359
    %v430 = vpop.f32.mrf.mxu0
    %v431 = vadd.f32 %v322, %v430
    %v432 = vpop.f32.mrf.mxu0
    %v433 = vpop.f32.mrf.mxu0
    %v434 = vadd.f32 %v322, %v433
    %v435 = vpop.f32.mrf.mxu0
    %436 = vmatprep.mubr.bf16.mxu0 0
    %437 = vmatmul.mubr.bf16.gmra.mxu0 %v360
    %v438 = vpop.f32.mrf.mxu0
    %v439 = vadd.f32 %v322, %v438
    %v440 = vpop.f32.mrf.mxu0
    %v441 = vpop.f32.mrf.mxu0
    %v442 = vadd.f32 %v322, %v441
    %v443 = vpop.f32.mrf.mxu0
    %444 = vmatprep.mubr.bf16.mxu0 0
    %445 = vmatmul.mubr.bf16.gmra.mxu0 %v361
    %v446 = vpop.f32.mrf.mxu0
    %v447 = vadd.f32 %v322, %v446
    %v448 = vpop.f32.mrf.mxu0
    %v449 = vpop.f32.mrf.mxu0
    %v450 = vadd.f32 %v322, %v449
    %v451 = vpop.f32.mrf.mxu0
    %452 = vmatprep.mubr.bf16.mxu0 0
    %453 = vmatmul.mubr.bf16.gmra.mxu0 %v362
    %v454 = vpop.f32.mrf.mxu0
    %v455 = vadd.f32 %v322, %v454
    %v456 = vpop.f32.mrf.mxu0
    %v457 = vpop.f32.mrf.mxu0
    %v458 = vadd.f32 %v322, %v457
    %v459 = vpop.f32.mrf.mxu0
    %460 = vmatprep.mubr.bf16.mxu0 0
    %461 = vmatmul.mubr.bf16.gmra.mxu0 %v363
    %v462 = vpop.f32.mrf.mxu0
    %v463 = vadd.f32 %v322, %v462
    %v464 = vpop.f32.mrf.mxu0
    %v465 = vpop.f32.mrf.mxu0
    %v466 = vadd.f32 %v322, %v465
    %v467 = vpop.f32.mrf.mxu0
    %468 = vdwg.mxu0
    %v469 = vmax.f32 %v407, 0.0
    %v470 = vmax.f32 %v410, 0.0
    %v471 = vmax.f32 %v415, 0.0
    %v472 = vmax.f32 %v418, 0.0
    %v473 = vmax.f32 %v423, 0.0
    %v474 = vmax.f32 %v426, 0.0
    %v475 = vmax.f32 %v431, 0.0
    %v476 = vmax.f32 %v434, 0.0
    %v477 = vmax.f32 %v439, 0.0
    %v478 = vmax.f32 %v442, 0.0
    %v479 = vmax.f32 %v447, 0.0
    %v480 = vmax.f32 %v450, 0.0
    %v481 = vmax.f32 %v455, 0.0
    %v482 = vmax.f32 %v458, 0.0
    %v483 = vmax.f32 %v463, 0.0
    %v484 = vmax.f32 %v466, 0.0
    %v485 = vadd.f32 %v469, %v108
    %v486 = vadd.f32 %v470, %v109
    %v487 = vadd.f32 %v471, %v110
    %v488 = vadd.f32 %v472, %v111
    %v489 = vadd.f32 %v473, %v112
    %v490 = vadd.f32 %v474, %v113
    %v491 = vadd.f32 %v475, %v114
    %v492 = vadd.f32 %v476, %v115
    %v493 = vadd.f32 %v477, %v116
    %v494 = vadd.f32 %v478, %v117
    %v495 = vadd.f32 %v479, %v118
    %v496 = vadd.f32 %v480, %v119
    %v497 = vadd.f32 %v481, %v120
    %v498 = vadd.f32 %v482, %v121
    %v499 = vadd.f32 %v483, %v122
    %v500 = vadd.f32 %v484, %v123
    %501 = vst [vmem:[#allocation8] sm:$0xff] %v485
    %502 = vst [vmem:[#allocation8 + $0x8] sm:$0xff] %v486
    %503 = vst [vmem:[#allocation8 + $0x10] sm:$0xff] %v487
    %504 = vst [vmem:[#allocation8 + $0x18] sm:$0xff] %v488
    %505 = vst [vmem:[#allocation8 + $0x20] sm:$0xff] %v489
    %506 = vst [vmem:[#allocation8 + $0x28] sm:$0xff] %v490
    %507 = vst [vmem:[#allocation8 + $0x30] sm:$0xff] %v491
    %508 = vst [vmem:[#allocation8 + $0x38] sm:$0xff] %v492
    %509 = vst [vmem:[#allocation8 + $0x40] sm:$0xff] %v493
    %510 = vst [vmem:[#allocation8 + $0x48] sm:$0xff] %v494
    %511 = vst [vmem:[#allocation8 + $0x50] sm:$0xff] %v495
    %512 = vst [vmem:[#allocation8 + $0x58] sm:$0xff] %v496
    %513 = vst [vmem:[#allocation8 + $0x60] sm:$0xff] %v497
    %514 = vst [vmem:[#allocation8 + $0x68] sm:$0xff] %v498
    %515 = vst [vmem:[#allocation8 + $0x70] sm:$0xff] %v499
    %516 = vst [vmem:[#allocation8 + $0x78] sm:$0xff] %v500
    %v517 = vld [vmem:[#allocation8] sm:$0xff]
    %v518 = vld [vmem:[#allocation8 + $0x8] sm:$0xff]
    %v519 = vld [vmem:[#allocation8 + $0x10] sm:$0xff]
    %v520 = vld [vmem:[#allocation8 + $0x18] sm:$0xff]
    %v521 = vld [vmem:[#allocation8 + $0x20] sm:$0xff]
    %v522 = vld [vmem:[#allocation8 + $0x28] sm:$0xff]
    %v523 = vld [vmem:[#allocation8 + $0x30] sm:$0xff]
    %v524 = vld [vmem:[#allocation8 + $0x38] sm:$0xff]
    %v525 = vld [vmem:[#allocation8 + $0x40] sm:$0xff]
    %v526 = vld [vmem:[#allocation8 + $0x48] sm:$0xff]
    %v527 = vld [vmem:[#allocation8 + $0x50] sm:$0xff]
    %v528 = vld [vmem:[#allocation8 + $0x58] sm:$0xff]
    %v529 = vld [vmem:[#allocation8 + $0x60] sm:$0xff]
    %v530 = vld [vmem:[#allocation8 + $0x68] sm:$0xff]
    %v531 = vld [vmem:[#allocation8 + $0x70] sm:$0xff]
    %v532 = vld [vmem:[#allocation8 + $0x78] sm:$0xff]
    %v533 = vpack.c.bf16 %v518, %v517
    %v534 = vpack.c.bf16 %v520, %v519
    %v535 = vpack.c.bf16 %v522, %v521
    %v536 = vpack.c.bf16 %v524, %v523
    %v537 = vpack.c.bf16 %v526, %v525
    %v538 = vpack.c.bf16 %v528, %v527
    %v539 = vpack.c.bf16 %v530, %v529
    %v540 = vpack.c.bf16 %v532, %v531
    %s541 = scalar_lea.vmem [#allocation7], 64
    %v542 = vld [vmem:[%s541] sm:$0xf]
    %v543 = vld [vmem:[%s541 + $0x4] sm:$0xf]
    %v544 = vld [vmem:[%s541 + $0x8] sm:$0xf]
    %v545 = vld [vmem:[%s541 + $0xc] sm:$0xf]
    %v546 = vld [vmem:[%s541 + $0x10] sm:$0xf]
    %v547 = vld [vmem:[%s541 + $0x14] sm:$0xf]
    %v548 = vld [vmem:[%s541 + $0x18] sm:$0xf]
    %v549 = vld [vmem:[%s541 + $0x1c] sm:$0xf]
    %v550 = vld [vmem:[%s541 + $0x20] sm:$0xf]
    %v551 = vld [vmem:[%s541 + $0x24] sm:$0xf]
    %v552 = vld [vmem:[%s541 + $0x28] sm:$0xf]
    %v553 = vld [vmem:[%s541 + $0x2c] sm:$0xf]
    %v554 = vld [vmem:[%s541 + $0x30] sm:$0xf]
    %v555 = vld [vmem:[%s541 + $0x34] sm:$0xf]
    %v556 = vld [vmem:[%s541 + $0x38] sm:$0xf]
    %v557 = vld [vmem:[%s541 + $0x3c] sm:$0xf]
    %v574 = vunpack.c.l.b16 %v542
    %v575 = vunpack.c.l.b16 %v543
    %v576 = vunpack.c.l.b16 %v544
    %v577 = vunpack.c.l.b16 %v545
    %v578 = vunpack.c.l.b16 %v546
    %v579 = vunpack.c.l.b16 %v547
    %v580 = vunpack.c.l.b16 %v548
    %v581 = vunpack.c.l.b16 %v549
    %v582 = vunpack.c.l.b16 %v550
    %v583 = vunpack.c.l.b16 %v551
    %v584 = vunpack.c.l.b16 %v552
    %v585 = vunpack.c.l.b16 %v553
    %v586 = vunpack.c.l.b16 %v554
    %v587 = vunpack.c.l.b16 %v555
    %v588 = vunpack.c.l.b16 %v556
    %v589 = vunpack.c.l.b16 %v557
    %v590 = vpack.c.b16 %v575, %v574
    %v591 = vpack.c.b16 %v577, %v576
    %v592 = vpack.c.b16 %v579, %v578
    %v593 = vpack.c.b16 %v581, %v580
    %v594 = vpack.c.b16 %v583, %v582
    %v595 = vpack.c.b16 %v585, %v584
    %v596 = vpack.c.b16 %v587, %v586
    %v597 = vpack.c.b16 %v589, %v588
    %606 = vmatprep.subr.bf16.mxu0 0
    %607 = vmatpush1.bf16.msra.mxu0 %v597
    %608 = vmatprep.subr.bf16.mxu0 0
    %609 = vmatpush1.bf16.msra.mxu0 %v596
    %610 = vmatprep.subr.bf16.mxu0 0
    %611 = vmatpush1.bf16.msra.mxu0 %v595
    %612 = vmatprep.subr.bf16.mxu0 0
    %613 = vmatpush1.bf16.msra.mxu0 %v594
    %614 = vmatprep.subr.bf16.mxu0 0
    %615 = vmatpush1.bf16.msra.mxu0 %v593
    %616 = vmatprep.subr.bf16.mxu0 0
    %617 = vmatpush1.bf16.msra.mxu0 %v592
    %618 = vmatprep.subr.bf16.mxu0 0
    %619 = vmatpush1.bf16.msra.mxu0 %v591
    %620 = vmatprep.subr.bf16.mxu0 0
    %621 = vmatpush1.bf16.msra.mxu0 %v590
    %622 = vmatprep.subr.bf16.mxu0 0
    %623 = vmatpush2.bf16.msra.mxu0 0
    %624 = vmatprep.subr.bf16.mxu0 0
    %625 = vmatpush2.bf16.msra.mxu0 0
    %626 = vmatprep.subr.bf16.mxu0 0
    %627 = vmatpush2.bf16.msra.mxu0 0
    %628 = vmatprep.subr.bf16.mxu0 0
    %629 = vmatpush2.bf16.msra.mxu0 0
    %630 = vmatprep.subr.bf16.mxu0 0
    %631 = vmatpush2.bf16.msra.mxu0 0
    %632 = vmatprep.subr.bf16.mxu0 0
    %633 = vmatpush2.bf16.msra.mxu0 0
    %634 = vmatprep.subr.bf16.mxu0 0
    %635 = vmatpush2.bf16.msra.mxu0 0
    %636 = vmatprep.subr.bf16.mxu0 0
    %637 = vmatpush2.bf16.msra.mxu0 0
    %638 = vmatprep.mubr.bf16.mxu0 0
    %639 = vmatmul.mubr.bf16.gmra.mxu0 %v533
    %v640 = vpop.f32.mrf.mxu0
    %v641 = vadd.f32 0.0, %v640
    %v642 = vpop.f32.mrf.mxu0
    %v643 = vpop.f32.mrf.mxu0
    %v644 = vadd.f32 0.0, %v643
    %v645 = vpop.f32.mrf.mxu0
    %646 = vmatprep.mubr.bf16.mxu0 0
    %647 = vmatmul.mubr.bf16.gmra.mxu0 %v534
    %v648 = vpop.f32.mrf.mxu0
    %v649 = vadd.f32 0.0, %v648
    %v650 = vpop.f32.mrf.mxu0
    %v651 = vpop.f32.mrf.mxu0
    %v652 = vadd.f32 0.0, %v651
    %v653 = vpop.f32.mrf.mxu0
    %654 = vmatprep.mubr.bf16.mxu0 0
    %655 = vmatmul.mubr.bf16.gmra.mxu0 %v535
    %v656 = vpop.f32.mrf.mxu0
    %v657 = vadd.f32 0.0, %v656
    %v658 = vpop.f32.mrf.mxu0
    %v659 = vpop.f32.mrf.mxu0
    %v660 = vadd.f32 0.0, %v659
    %v661 = vpop.f32.mrf.mxu0
    %662 = vmatprep.mubr.bf16.mxu0 0
    %663 = vmatmul.mubr.bf16.gmra.mxu0 %v536
    %v664 = vpop.f32.mrf.mxu0
    %v665 = vadd.f32 0.0, %v664
    %v666 = vpop.f32.mrf.mxu0
    %v667 = vpop.f32.mrf.mxu0
    %v668 = vadd.f32 0.0, %v667
    %v669 = vpop.f32.mrf.mxu0
    %670 = vmatprep.mubr.bf16.mxu0 0
    %671 = vmatmul.mubr.bf16.gmra.mxu0 %v537
    %v672 = vpop.f32.mrf.mxu0
    %v673 = vadd.f32 0.0, %v672
    %v674 = vpop.f32.mrf.mxu0
    %v675 = vpop.f32.mrf.mxu0
    %v676 = vadd.f32 0.0, %v675
    %v677 = vpop.f32.mrf.mxu0
    %678 = vmatprep.mubr.bf16.mxu0 0
    %679 = vmatmul.mubr.bf16.gmra.mxu0 %v538
    %v680 = vpop.f32.mrf.mxu0
    %v681 = vadd.f32 0.0, %v680
    %v682 = vpop.f32.mrf.mxu0
    %v683 = vpop.f32.mrf.mxu0
    %v684 = vadd.f32 0.0, %v683
    %v685 = vpop.f32.mrf.mxu0
    %686 = vmatprep.mubr.bf16.mxu0 0
    %687 = vmatmul.mubr.bf16.gmra.mxu0 %v539
    %v688 = vpop.f32.mrf.mxu0
    %v689 = vadd.f32 0.0, %v688
    %v690 = vpop.f32.mrf.mxu0
    %v691 = vpop.f32.mrf.mxu0
    %v692 = vadd.f32 0.0, %v691
    %v693 = vpop.f32.mrf.mxu0
    %694 = vmatprep.mubr.bf16.mxu0 0
    %695 = vmatmul.mubr.bf16.gmra.mxu0 %v540
    %v696 = vpop.f32.mrf.mxu0
    %v697 = vadd.f32 0.0, %v696
    %v698 = vpop.f32.mrf.mxu0
    %v699 = vpop.f32.mrf.mxu0
    %v700 = vadd.f32 0.0, %v699
    %v701 = vpop.f32.mrf.mxu0
    %702 = vdwg.mxu0
    %v703 = vld [vmem:[#allocation5] sm:$0xf]
    %v704 = vld [vmem:[#allocation5 + $0x4] sm:$0xf]
    %v705 = vld [vmem:[#allocation5 + $0x8] sm:$0xf]
    %v706 = vld [vmem:[#allocation5 + $0xc] sm:$0xf]
    %v707 = vld [vmem:[#allocation5 + $0x10] sm:$0xf]
    %v708 = vld [vmem:[#allocation5 + $0x14] sm:$0xf]
    %v709 = vld [vmem:[#allocation5 + $0x18] sm:$0xf]
    %v710 = vld [vmem:[#allocation5 + $0x1c] sm:$0xf]
    %v711 = vld [vmem:[#allocation5 + $0x20] sm:$0xf]
    %v712 = vld [vmem:[#allocation5 + $0x24] sm:$0xf]
    %v713 = vld [vmem:[#allocation5 + $0x28] sm:$0xf]
    %v714 = vld [vmem:[#allocation5 + $0x2c] sm:$0xf]
    %v715 = vld [vmem:[#allocation5 + $0x30] sm:$0xf]
    %v716 = vld [vmem:[#allocation5 + $0x34] sm:$0xf]
    %v717 = vld [vmem:[#allocation5 + $0x38] sm:$0xf]
    %v718 = vld [vmem:[#allocation5 + $0x3c] sm:$0xf]
    %v719 = vpack.c.bf16 %v644, %v641
    %v720 = vpack.c.bf16 %v652, %v649
    %v721 = vpack.c.bf16 %v660, %v657
    %v722 = vpack.c.bf16 %v668, %v665
    %v723 = vpack.c.bf16 %v676, %v673
    %v724 = vpack.c.bf16 %v684, %v681
    %v725 = vpack.c.bf16 %v692, %v689
    %v726 = vpack.c.bf16 %v700, %v697
    %s727 = scalar_lea.vmem %s3, 1
    %v728 = vld [vmem:[%s727] sm:$0x1]
    %v730 = vlaneseq
    %v731 = vshrl.u32 %v730, 7
    %v732 = vsub.s32 0, %v731
    %v733 = vrot.slane %v728, %v732
    %v751 = vunpack.c.l.b16 %v703
    %v752 = vunpack.c.l.b16 %v704
    %v753 = vunpack.c.l.b16 %v705
    %v754 = vunpack.c.l.b16 %v706
    %v755 = vunpack.c.l.b16 %v707
    %v756 = vunpack.c.l.b16 %v708
    %v757 = vunpack.c.l.b16 %v709
    %v758 = vunpack.c.l.b16 %v710
    %v759 = vunpack.c.l.b16 %v711
    %v760 = vunpack.c.l.b16 %v712
    %v761 = vunpack.c.l.b16 %v713
    %v762 = vunpack.c.l.b16 %v714
    %v763 = vunpack.c.l.b16 %v715
    %v764 = vunpack.c.l.b16 %v716
    %v765 = vunpack.c.l.b16 %v717
    %v766 = vunpack.c.l.b16 %v718
    %v767 = vpack.c.b16 %v752, %v751
    %v768 = vpack.c.b16 %v754, %v753
    %v769 = vpack.c.b16 %v756, %v755
    %v770 = vpack.c.b16 %v758, %v757
    %v771 = vpack.c.b16 %v760, %v759
    %v772 = vpack.c.b16 %v762, %v761
    %v773 = vpack.c.b16 %v764, %v763
    %v774 = vpack.c.b16 %v766, %v765
    %783 = vmatprep.subr.bf16.mxu0 0
    %784 = vmatpush1.bf16.msra.mxu0 %v726
    %785 = vmatprep.subr.bf16.mxu0 0
    %786 = vmatpush1.bf16.msra.mxu0 %v725
    %787 = vmatprep.subr.bf16.mxu0 0
    %788 = vmatpush1.bf16.msra.mxu0 %v724
    %789 = vmatprep.subr.bf16.mxu0 0
    %790 = vmatpush1.bf16.msra.mxu0 %v723
    %791 = vmatprep.subr.bf16.mxu0 0
    %792 = vmatpush1.bf16.msra.mxu0 %v722
    %793 = vmatprep.subr.bf16.mxu0 0
    %794 = vmatpush1.bf16.msra.mxu0 %v721
    %795 = vmatprep.subr.bf16.mxu0 0
    %796 = vmatpush1.bf16.msra.mxu0 %v720
    %797 = vmatprep.subr.bf16.mxu0 0
    %798 = vmatpush1.bf16.msra.mxu0 %v719
    %799 = vmatprep.subr.bf16.mxu0 0
    %800 = vmatpush2.bf16.msra.mxu0 0
    %801 = vmatprep.subr.bf16.mxu0 0
    %802 = vmatpush2.bf16.msra.mxu0 0
    %803 = vmatprep.subr.bf16.mxu0 0
    %804 = vmatpush2.bf16.msra.mxu0 0
    %805 = vmatprep.subr.bf16.mxu0 0
    %806 = vmatpush2.bf16.msra.mxu0 0
    %807 = vmatprep.subr.bf16.mxu0 0
    %808 = vmatpush2.bf16.msra.mxu0 0
    %809 = vmatprep.subr.bf16.mxu0 0
    %810 = vmatpush2.bf16.msra.mxu0 0
    %811 = vmatprep.subr.bf16.mxu0 0
    %812 = vmatpush2.bf16.msra.mxu0 0
    %813 = vmatprep.subr.bf16.mxu0 0
    %814 = vmatpush2.bf16.msra.mxu0 0
    %815 = vmatprep.mubr.bf16.mxu0 0
    %816 = vmatmul.mubr.bf16.gmra.mxu0 %v767
    %v817 = vpop.f32.mrf.mxu0
    %v818 = vadd.f32 %v733, %v817
    %v819 = vpop.f32.mrf.mxu0
    %v820 = vpop.f32.mrf.mxu0
    %v821 = vadd.f32 %v733, %v820
    %v822 = vpop.f32.mrf.mxu0
    %823 = vmatprep.mubr.bf16.mxu0 0
    %824 = vmatmul.mubr.bf16.gmra.mxu0 %v768
    %v825 = vpop.f32.mrf.mxu0
    %v826 = vadd.f32 %v733, %v825
    %v827 = vpop.f32.mrf.mxu0
    %v828 = vpop.f32.mrf.mxu0
    %v829 = vadd.f32 %v733, %v828
    %v830 = vpop.f32.mrf.mxu0
    %831 = vmatprep.mubr.bf16.mxu0 0
    %832 = vmatmul.mubr.bf16.gmra.mxu0 %v769
    %v833 = vpop.f32.mrf.mxu0
    %v834 = vadd.f32 %v733, %v833
    %v835 = vpop.f32.mrf.mxu0
    %v836 = vpop.f32.mrf.mxu0
    %v837 = vadd.f32 %v733, %v836
    %v838 = vpop.f32.mrf.mxu0
    %839 = vmatprep.mubr.bf16.mxu0 0
    %840 = vmatmul.mubr.bf16.gmra.mxu0 %v770
    %v841 = vpop.f32.mrf.mxu0
    %v842 = vadd.f32 %v733, %v841
    %v843 = vpop.f32.mrf.mxu0
    %v844 = vpop.f32.mrf.mxu0
    %v845 = vadd.f32 %v733, %v844
    %v846 = vpop.f32.mrf.mxu0
    %847 = vmatprep.mubr.bf16.mxu0 0
    %848 = vmatmul.mubr.bf16.gmra.mxu0 %v771
    %v849 = vpop.f32.mrf.mxu0
    %v850 = vadd.f32 %v733, %v849
    %v851 = vpop.f32.mrf.mxu0
    %v852 = vpop.f32.mrf.mxu0
    %v853 = vadd.f32 %v733, %v852
    %v854 = vpop.f32.mrf.mxu0
    %855 = vmatprep.mubr.bf16.mxu0 0
    %856 = vmatmul.mubr.bf16.gmra.mxu0 %v772
    %v857 = vpop.f32.mrf.mxu0
    %v858 = vadd.f32 %v733, %v857
    %v859 = vpop.f32.mrf.mxu0
    %v860 = vpop.f32.mrf.mxu0
    %v861 = vadd.f32 %v733, %v860
    %v862 = vpop.f32.mrf.mxu0
    %863 = vmatprep.mubr.bf16.mxu0 0
    %864 = vmatmul.mubr.bf16.gmra.mxu0 %v773
    %v865 = vpop.f32.mrf.mxu0
    %v866 = vadd.f32 %v733, %v865
    %v867 = vpop.f32.mrf.mxu0
    %v868 = vpop.f32.mrf.mxu0
    %v869 = vadd.f32 %v733, %v868
    %v870 = vpop.f32.mrf.mxu0
    %871 = vmatprep.mubr.bf16.mxu0 0
    %872 = vmatmul.mubr.bf16.gmra.mxu0 %v774
    %v873 = vpop.f32.mrf.mxu0
    %v874 = vadd.f32 %v733, %v873
    %v875 = vpop.f32.mrf.mxu0
    %v876 = vpop.f32.mrf.mxu0
    %v877 = vadd.f32 %v733, %v876
    %v878 = vpop.f32.mrf.mxu0
    %879 = vdwg.mxu0
    %v880 = vmax.f32 %v818, 0.0
    %v881 = vmax.f32 %v821, 0.0
    %v882 = vmax.f32 %v826, 0.0
    %v883 = vmax.f32 %v829, 0.0
    %v884 = vmax.f32 %v834, 0.0
    %v885 = vmax.f32 %v837, 0.0
    %v886 = vmax.f32 %v842, 0.0
    %v887 = vmax.f32 %v845, 0.0
    %v888 = vmax.f32 %v850, 0.0
    %v889 = vmax.f32 %v853, 0.0
    %v890 = vmax.f32 %v858, 0.0
    %v891 = vmax.f32 %v861, 0.0
    %v892 = vmax.f32 %v866, 0.0
    %v893 = vmax.f32 %v869, 0.0
    %v894 = vmax.f32 %v874, 0.0
    %v895 = vmax.f32 %v877, 0.0
    %v896 = vadd.f32 %v880, %v517
    %v897 = vadd.f32 %v881, %v518
    %v898 = vadd.f32 %v882, %v519
    %v899 = vadd.f32 %v883, %v520
    %v900 = vadd.f32 %v884, %v521
    %v901 = vadd.f32 %v885, %v522
    %v902 = vadd.f32 %v886, %v523
    %v903 = vadd.f32 %v887, %v524
    %v904 = vadd.f32 %v888, %v525
    %v905 = vadd.f32 %v889, %v526
    %v906 = vadd.f32 %v890, %v527
    %v907 = vadd.f32 %v891, %v528
    %v908 = vadd.f32 %v892, %v529
    %v909 = vadd.f32 %v893, %v530
    %v910 = vadd.f32 %v894, %v531
    %v911 = vadd.f32 %v895, %v532
    %912 = vst [vmem:[#allocation8] sm:$0xff] %v896
    %913 = vst [vmem:[#allocation8 + $0x8] sm:$0xff] %v897
    %914 = vst [vmem:[#allocation8 + $0x10] sm:$0xff] %v898
    %915 = vst [vmem:[#allocation8 + $0x18] sm:$0xff] %v899
    %916 = vst [vmem:[#allocation8 + $0x20] sm:$0xff] %v900
    %917 = vst [vmem:[#allocation8 + $0x28] sm:$0xff] %v901
    %918 = vst [vmem:[#allocation8 + $0x30] sm:$0xff] %v902
    %919 = vst [vmem:[#allocation8 + $0x38] sm:$0xff] %v903
    %920 = vst [vmem:[#allocation8 + $0x40] sm:$0xff] %v904
    %921 = vst [vmem:[#allocation8 + $0x48] sm:$0xff] %v905
    %922 = vst [vmem:[#allocation8 + $0x50] sm:$0xff] %v906
    %923 = vst [vmem:[#allocation8 + $0x58] sm:$0xff] %v907
    %924 = vst [vmem:[#allocation8 + $0x60] sm:$0xff] %v908
    %925 = vst [vmem:[#allocation8 + $0x68] sm:$0xff] %v909
    %926 = vst [vmem:[#allocation8 + $0x70] sm:$0xff] %v910
    %927 = vst [vmem:[#allocation8 + $0x78] sm:$0xff] %v911
    %v928 = vld [vmem:[#allocation8] sm:$0xff]
    %v929 = vld [vmem:[#allocation8 + $0x8] sm:$0xff]
    %v930 = vld [vmem:[#allocation8 + $0x10] sm:$0xff]
    %v931 = vld [vmem:[#allocation8 + $0x18] sm:$0xff]
    %v932 = vld [vmem:[#allocation8 + $0x20] sm:$0xff]
    %v933 = vld [vmem:[#allocation8 + $0x28] sm:$0xff]
    %v934 = vld [vmem:[#allocation8 + $0x30] sm:$0xff]
    %v935 = vld [vmem:[#allocation8 + $0x38] sm:$0xff]
    %v936 = vld [vmem:[#allocation8 + $0x40] sm:$0xff]
    %v937 = vld [vmem:[#allocation8 + $0x48] sm:$0xff]
    %v938 = vld [vmem:[#allocation8 + $0x50] sm:$0xff]
    %v939 = vld [vmem:[#allocation8 + $0x58] sm:$0xff]
    %v940 = vld [vmem:[#allocation8 + $0x60] sm:$0xff]
    %v941 = vld [vmem:[#allocation8 + $0x68] sm:$0xff]
    %v942 = vld [vmem:[#allocation8 + $0x70] sm:$0xff]
    %v943 = vld [vmem:[#allocation8 + $0x78] sm:$0xff]
    %v944 = vpack.c.bf16 %v929, %v928
    %v945 = vpack.c.bf16 %v931, %v930
    %v946 = vpack.c.bf16 %v933, %v932
    %v947 = vpack.c.bf16 %v935, %v934
    %v948 = vpack.c.bf16 %v937, %v936
    %v949 = vpack.c.bf16 %v939, %v938
    %v950 = vpack.c.bf16 %v941, %v940
    %v951 = vpack.c.bf16 %v943, %v942
    %s952 = scalar_lea.vmem [#allocation7], 128
    %v953 = vld [vmem:[%s952] sm:$0xf]
    %v954 = vld [vmem:[%s952 + $0x4] sm:$0xf]
    %v955 = vld [vmem:[%s952 + $0x8] sm:$0xf]
    %v956 = vld [vmem:[%s952 + $0xc] sm:$0xf]
    %v957 = vld [vmem:[%s952 + $0x10] sm:$0xf]
    %v958 = vld [vmem:[%s952 + $0x14] sm:$0xf]
    %v959 = vld [vmem:[%s952 + $0x18] sm:$0xf]
    %v960 = vld [vmem:[%s952 + $0x1c] sm:$0xf]
    %v961 = vld [vmem:[%s952 + $0x20] sm:$0xf]
    %v962 = vld [vmem:[%s952 + $0x24] sm:$0xf]
    %v963 = vld [vmem:[%s952 + $0x28] sm:$0xf]
    %v964 = vld [vmem:[%s952 + $0x2c] sm:$0xf]
    %v965 = vld [vmem:[%s952 + $0x30] sm:$0xf]
    %v966 = vld [vmem:[%s952 + $0x34] sm:$0xf]
    %v967 = vld [vmem:[%s952 + $0x38] sm:$0xf]
    %v968 = vld [vmem:[%s952 + $0x3c] sm:$0xf]
    %v985 = vunpack.c.l.b16 %v953
    %v986 = vunpack.c.l.b16 %v954
    %v987 = vunpack.c.l.b16 %v955
    %v988 = vunpack.c.l.b16 %v956
    %v989 = vunpack.c.l.b16 %v957
    %v990 = vunpack.c.l.b16 %v958
    %v991 = vunpack.c.l.b16 %v959
    %v992 = vunpack.c.l.b16 %v960
    %v993 = vunpack.c.l.b16 %v961
    %v994 = vunpack.c.l.b16 %v962
    %v995 = vunpack.c.l.b16 %v963
    %v996 = vunpack.c.l.b16 %v964
    %v997 = vunpack.c.l.b16 %v965
    %v998 = vunpack.c.l.b16 %v966
    %v999 = vunpack.c.l.b16 %v967
    %v1000 = vunpack.c.l.b16 %v968
    %v1001 = vpack.c.b16 %v986, %v985
    %v1002 = vpack.c.b16 %v988, %v987
    %v1003 = vpack.c.b16 %v990, %v989
    %v1004 = vpack.c.b16 %v992, %v991
    %v1005 = vpack.c.b16 %v994, %v993
    %v1006 = vpack.c.b16 %v996, %v995
    %v1007 = vpack.c.b16 %v998, %v997
    %v1008 = vpack.c.b16 %v1000, %v999
    %1017 = vmatprep.subr.bf16.mxu0 0
    %1018 = vmatpush1.bf16.msra.mxu0 %v1008
    %1019 = vmatprep.subr.bf16.mxu0 0
    %1020 = vmatpush1.bf16.msra.mxu0 %v1007
    %1021 = vmatprep.subr.bf16.mxu0 0
    %1022 = vmatpush1.bf16.msra.mxu0 %v1006
    %1023 = vmatprep.subr.bf16.mxu0 0
    %1024 = vmatpush1.bf16.msra.mxu0 %v1005
    %1025 = vmatprep.subr.bf16.mxu0 0
    %1026 = vmatpush1.bf16.msra.mxu0 %v1004
    %1027 = vmatprep.subr.bf16.mxu0 0
    %1028 = vmatpush1.bf16.msra.mxu0 %v1003
    %1029 = vmatprep.subr.bf16.mxu0 0
    %1030 = vmatpush1.bf16.msra.mxu0 %v1002
    %1031 = vmatprep.subr.bf16.mxu0 0
    %1032 = vmatpush1.bf16.msra.mxu0 %v1001
    %1033 = vmatprep.subr.bf16.mxu0 0
    %1034 = vmatpush2.bf16.msra.mxu0 0
    %1035 = vmatprep.subr.bf16.mxu0 0
    %1036 = vmatpush2.bf16.msra.mxu0 0
    %1037 = vmatprep.subr.bf16.mxu0 0
    %1038 = vmatpush2.bf16.msra.mxu0 0
    %1039 = vmatprep.subr.bf16.mxu0 0
    %1040 = vmatpush2.bf16.msra.mxu0 0
    %1041 = vmatprep.subr.bf16.mxu0 0
    %1042 = vmatpush2.bf16.msra.mxu0 0
    %1043 = vmatprep.subr.bf16.mxu0 0
    %1044 = vmatpush2.bf16.msra.mxu0 0
    %1045 = vmatprep.subr.bf16.mxu0 0
    %1046 = vmatpush2.bf16.msra.mxu0 0
    %1047 = vmatprep.subr.bf16.mxu0 0
    %1048 = vmatpush2.bf16.msra.mxu0 0
    %1049 = vmatprep.mubr.bf16.mxu0 0
    %1050 = vmatmul.mubr.bf16.gmra.mxu0 %v944
    %v1051 = vpop.f32.mrf.mxu0
    %v1052 = vadd.f32 0.0, %v1051
    %v1053 = vpop.f32.mrf.mxu0
    %v1054 = vpop.f32.mrf.mxu0
    %v1055 = vadd.f32 0.0, %v1054
    %v1056 = vpop.f32.mrf.mxu0
    %1057 = vmatprep.mubr.bf16.mxu0 0
    %1058 = vmatmul.mubr.bf16.gmra.mxu0 %v945
    %v1059 = vpop.f32.mrf.mxu0
    %v1060 = vadd.f32 0.0, %v1059
    %v1061 = vpop.f32.mrf.mxu0
    %v1062 = vpop.f32.mrf.mxu0
    %v1063 = vadd.f32 0.0, %v1062
    %v1064 = vpop.f32.mrf.mxu0
    %1065 = vmatprep.mubr.bf16.mxu0 0
    %1066 = vmatmul.mubr.bf16.gmra.mxu0 %v946
    %v1067 = vpop.f32.mrf.mxu0
    %v1068 = vadd.f32 0.0, %v1067
    %v1069 = vpop.f32.mrf.mxu0
    %v1070 = vpop.f32.mrf.mxu0
    %v1071 = vadd.f32 0.0, %v1070
    %v1072 = vpop.f32.mrf.mxu0
    %1073 = vmatprep.mubr.bf16.mxu0 0
    %1074 = vmatmul.mubr.bf16.gmra.mxu0 %v947
    %v1075 = vpop.f32.mrf.mxu0
    %v1076 = vadd.f32 0.0, %v1075
    %v1077 = vpop.f32.mrf.mxu0
    %v1078 = vpop.f32.mrf.mxu0
    %v1079 = vadd.f32 0.0, %v1078
    %v1080 = vpop.f32.mrf.mxu0
    %1081 = vmatprep.mubr.bf16.mxu0 0
    %1082 = vmatmul.mubr.bf16.gmra.mxu0 %v948
    %v1083 = vpop.f32.mrf.mxu0
    %v1084 = vadd.f32 0.0, %v1083
    %v1085 = vpop.f32.mrf.mxu0
    %v1086 = vpop.f32.mrf.mxu0
    %v1087 = vadd.f32 0.0, %v1086
    %v1088 = vpop.f32.mrf.mxu0
    %1089 = vmatprep.mubr.bf16.mxu0 0
    %1090 = vmatmul.mubr.bf16.gmra.mxu0 %v949
    %v1091 = vpop.f32.mrf.mxu0
    %v1092 = vadd.f32 0.0, %v1091
    %v1093 = vpop.f32.mrf.mxu0
    %v1094 = vpop.f32.mrf.mxu0
    %v1095 = vadd.f32 0.0, %v1094
    %v1096 = vpop.f32.mrf.mxu0
    %1097 = vmatprep.mubr.bf16.mxu0 0
    %1098 = vmatmul.mubr.bf16.gmra.mxu0 %v950
    %v1099 = vpop.f32.mrf.mxu0
    %v1100 = vadd.f32 0.0, %v1099
    %v1101 = vpop.f32.mrf.mxu0
    %v1102 = vpop.f32.mrf.mxu0
    %v1103 = vadd.f32 0.0, %v1102
    %v1104 = vpop.f32.mrf.mxu0
    %1105 = vmatprep.mubr.bf16.mxu0 0
    %1106 = vmatmul.mubr.bf16.gmra.mxu0 %v951
    %v1107 = vpop.f32.mrf.mxu0
    %v1108 = vadd.f32 0.0, %v1107
    %v1109 = vpop.f32.mrf.mxu0
    %v1110 = vpop.f32.mrf.mxu0
    %v1111 = vadd.f32 0.0, %v1110
    %v1112 = vpop.f32.mrf.mxu0
    %1113 = vdwg.mxu0
    %v1114 = vld [vmem:[#allocation5] sm:$0xf]
    %v1115 = vld [vmem:[#allocation5 + $0x4] sm:$0xf]
    %v1116 = vld [vmem:[#allocation5 + $0x8] sm:$0xf]
    %v1117 = vld [vmem:[#allocation5 + $0xc] sm:$0xf]
    %v1118 = vld [vmem:[#allocation5 + $0x10] sm:$0xf]
    %v1119 = vld [vmem:[#allocation5 + $0x14] sm:$0xf]
    %v1120 = vld [vmem:[#allocation5 + $0x18] sm:$0xf]
    %v1121 = vld [vmem:[#allocation5 + $0x1c] sm:$0xf]
    %v1122 = vld [vmem:[#allocation5 + $0x20] sm:$0xf]
    %v1123 = vld [vmem:[#allocation5 + $0x24] sm:$0xf]
    %v1124 = vld [vmem:[#allocation5 + $0x28] sm:$0xf]
    %v1125 = vld [vmem:[#allocation5 + $0x2c] sm:$0xf]
    %v1126 = vld [vmem:[#allocation5 + $0x30] sm:$0xf]
    %v1127 = vld [vmem:[#allocation5 + $0x34] sm:$0xf]
    %v1128 = vld [vmem:[#allocation5 + $0x38] sm:$0xf]
    %v1129 = vld [vmem:[#allocation5 + $0x3c] sm:$0xf]
    %v1130 = vpack.c.bf16 %v1055, %v1052
    %v1131 = vpack.c.bf16 %v1063, %v1060
    %v1132 = vpack.c.bf16 %v1071, %v1068
    %v1133 = vpack.c.bf16 %v1079, %v1076
    %v1134 = vpack.c.bf16 %v1087, %v1084
    %v1135 = vpack.c.bf16 %v1095, %v1092
    %v1136 = vpack.c.bf16 %v1103, %v1100
    %v1137 = vpack.c.bf16 %v1111, %v1108
    %s1138 = scalar_lea.vmem %s3, 2
    %v1139 = vld [vmem:[%s1138] sm:$0x1]
    %v1141 = vlaneseq
    %v1142 = vshrl.u32 %v1141, 7
    %v1143 = vsub.s32 0, %v1142
    %v1144 = vrot.slane %v1139, %v1143
    %v1162 = vunpack.c.l.b16 %v1114
    %v1163 = vunpack.c.l.b16 %v1115
    %v1164 = vunpack.c.l.b16 %v1116
    %v1165 = vunpack.c.l.b16 %v1117
    %v1166 = vunpack.c.l.b16 %v1118
    %v1167 = vunpack.c.l.b16 %v1119
    %v1168 = vunpack.c.l.b16 %v1120
    %v1169 = vunpack.c.l.b16 %v1121
    %v1170 = vunpack.c.l.b16 %v1122
    %v1171 = vunpack.c.l.b16 %v1123
    %v1172 = vunpack.c.l.b16 %v1124
    %v1173 = vunpack.c.l.b16 %v1125
    %v1174 = vunpack.c.l.b16 %v1126
    %v1175 = vunpack.c.l.b16 %v1127
    %v1176 = vunpack.c.l.b16 %v1128
    %v1177 = vunpack.c.l.b16 %v1129
    %v1178 = vpack.c.b16 %v1163, %v1162
    %v1179 = vpack.c.b16 %v1165, %v1164
    %v1180 = vpack.c.b16 %v1167, %v1166
    %v1181 = vpack.c.b16 %v1169, %v1168
    %v1182 = vpack.c.b16 %v1171, %v1170
    %v1183 = vpack.c.b16 %v1173, %v1172
    %v1184 = vpack.c.b16 %v1175, %v1174
    %v1185 = vpack.c.b16 %v1177, %v1176
    %1194 = vmatprep.subr.bf16.mxu0 0
    %1195 = vmatpush1.bf16.msra.mxu0 %v1137
    %1196 = vmatprep.subr.bf16.mxu0 0
    %1197 = vmatpush1.bf16.msra.mxu0 %v1136
    %1198 = vmatprep.subr.bf16.mxu0 0
    %1199 = vmatpush1.bf16.msra.mxu0 %v1135
    %1200 = vmatprep.subr.bf16.mxu0 0
    %1201 = vmatpush1.bf16.msra.mxu0 %v1134
    %1202 = vmatprep.subr.bf16.mxu0 0
    %1203 = vmatpush1.bf16.msra.mxu0 %v1133
    %1204 = vmatprep.subr.bf16.mxu0 0
    %1205 = vmatpush1.bf16.msra.mxu0 %v1132
    %1206 = vmatprep.subr.bf16.mxu0 0
    %1207 = vmatpush1.bf16.msra.mxu0 %v1131
    %1208 = vmatprep.subr.bf16.mxu0 0
    %1209 = vmatpush1.bf16.msra.mxu0 %v1130
    %1210 = vmatprep.subr.bf16.mxu0 0
    %1211 = vmatpush2.bf16.msra.mxu0 0
    %1212 = vmatprep.subr.bf16.mxu0 0
    %1213 = vmatpush2.bf16.msra.mxu0 0
    %1214 = vmatprep.subr.bf16.mxu0 0
    %1215 = vmatpush2.bf16.msra.mxu0 0
    %1216 = vmatprep.subr.bf16.mxu0 0
    %1217 = vmatpush2.bf16.msra.mxu0 0
    %1218 = vmatprep.subr.bf16.mxu0 0
    %1219 = vmatpush2.bf16.msra.mxu0 0
    %1220 = vmatprep.subr.bf16.mxu0 0
    %1221 = vmatpush2.bf16.msra.mxu0 0
    %1222 = vmatprep.subr.bf16.mxu0 0
    %1223 = vmatpush2.bf16.msra.mxu0 0
    %1224 = vmatprep.subr.bf16.mxu0 0
    %1225 = vmatpush2.bf16.msra.mxu0 0
    %1226 = vmatprep.mubr.bf16.mxu0 0
    %1227 = vmatmul.mubr.bf16.gmra.mxu0 %v1178
    %v1228 = vpop.f32.mrf.mxu0
    %v1229 = vadd.f32 %v1144, %v1228
    %v1230 = vpop.f32.mrf.mxu0
    %v1231 = vpop.f32.mrf.mxu0
    %v1232 = vadd.f32 %v1144, %v1231
    %v1233 = vpop.f32.mrf.mxu0
    %1234 = vmatprep.mubr.bf16.mxu0 0
    %1235 = vmatmul.mubr.bf16.gmra.mxu0 %v1179
    %v1236 = vpop.f32.mrf.mxu0
    %v1237 = vadd.f32 %v1144, %v1236
    %v1238 = vpop.f32.mrf.mxu0
    %v1239 = vpop.f32.mrf.mxu0
    %v1240 = vadd.f32 %v1144, %v1239
    %v1241 = vpop.f32.mrf.mxu0
    %1242 = vmatprep.mubr.bf16.mxu0 0
    %1243 = vmatmul.mubr.bf16.gmra.mxu0 %v1180
    %v1244 = vpop.f32.mrf.mxu0
    %v1245 = vadd.f32 %v1144, %v1244
    %v1246 = vpop.f32.mrf.mxu0
    %v1247 = vpop.f32.mrf.mxu0
    %v1248 = vadd.f32 %v1144, %v1247
    %v1249 = vpop.f32.mrf.mxu0
    %1250 = vmatprep.mubr.bf16.mxu0 0
    %1251 = vmatmul.mubr.bf16.gmra.mxu0 %v1181
    %v1252 = vpop.f32.mrf.mxu0
    %v1253 = vadd.f32 %v1144, %v1252
    %v1254 = vpop.f32.mrf.mxu0
    %v1255 = vpop.f32.mrf.mxu0
    %v1256 = vadd.f32 %v1144, %v1255
    %v1257 = vpop.f32.mrf.mxu0
    %1258 = vmatprep.mubr.bf16.mxu0 0
    %1259 = vmatmul.mubr.bf16.gmra.mxu0 %v1182
    %v1260 = vpop.f32.mrf.mxu0
    %v1261 = vadd.f32 %v1144, %v1260
    %v1262 = vpop.f32.mrf.mxu0
    %v1263 = vpop.f32.mrf.mxu0
    %v1264 = vadd.f32 %v1144, %v1263
    %v1265 = vpop.f32.mrf.mxu0
    %1266 = vmatprep.mubr.bf16.mxu0 0
    %1267 = vmatmul.mubr.bf16.gmra.mxu0 %v1183
    %v1268 = vpop.f32.mrf.mxu0
    %v1269 = vadd.f32 %v1144, %v1268
    %v1270 = vpop.f32.mrf.mxu0
    %v1271 = vpop.f32.mrf.mxu0
    %v1272 = vadd.f32 %v1144, %v1271
    %v1273 = vpop.f32.mrf.mxu0
    %1274 = vmatprep.mubr.bf16.mxu0 0
    %1275 = vmatmul.mubr.bf16.gmra.mxu0 %v1184
    %v1276 = vpop.f32.mrf.mxu0
    %v1277 = vadd.f32 %v1144, %v1276
    %v1278 = vpop.f32.mrf.mxu0
    %v1279 = vpop.f32.mrf.mxu0
    %v1280 = vadd.f32 %v1144, %v1279
    %v1281 = vpop.f32.mrf.mxu0
    %1282 = vmatprep.mubr.bf16.mxu0 0
    %1283 = vmatmul.mubr.bf16.gmra.mxu0 %v1185
    %v1284 = vpop.f32.mrf.mxu0
    %v1285 = vadd.f32 %v1144, %v1284
    %v1286 = vpop.f32.mrf.mxu0
    %v1287 = vpop.f32.mrf.mxu0
    %v1288 = vadd.f32 %v1144, %v1287
    %v1289 = vpop.f32.mrf.mxu0
    %1290 = vdwg.mxu0
    %v1291 = vmax.f32 %v1229, 0.0
    %v1292 = vmax.f32 %v1232, 0.0
    %v1293 = vmax.f32 %v1237, 0.0
    %v1294 = vmax.f32 %v1240, 0.0
    %v1295 = vmax.f32 %v1245, 0.0
    %v1296 = vmax.f32 %v1248, 0.0
    %v1297 = vmax.f32 %v1253, 0.0
    %v1298 = vmax.f32 %v1256, 0.0
    %v1299 = vmax.f32 %v1261, 0.0
    %v1300 = vmax.f32 %v1264, 0.0
    %v1301 = vmax.f32 %v1269, 0.0
    %v1302 = vmax.f32 %v1272, 0.0
    %v1303 = vmax.f32 %v1277, 0.0
    %v1304 = vmax.f32 %v1280, 0.0
    %v1305 = vmax.f32 %v1285, 0.0
    %v1306 = vmax.f32 %v1288, 0.0
    %v1307 = vadd.f32 %v1291, %v928
    %v1308 = vadd.f32 %v1292, %v929
    %v1309 = vadd.f32 %v1293, %v930
    %v1310 = vadd.f32 %v1294, %v931
    %v1311 = vadd.f32 %v1295, %v932
    %v1312 = vadd.f32 %v1296, %v933
    %v1313 = vadd.f32 %v1297, %v934
    %v1314 = vadd.f32 %v1298, %v935
    %v1315 = vadd.f32 %v1299, %v936
    %v1316 = vadd.f32 %v1300, %v937
    %v1317 = vadd.f32 %v1301, %v938
    %v1318 = vadd.f32 %v1302, %v939
    %v1319 = vadd.f32 %v1303, %v940
    %v1320 = vadd.f32 %v1304, %v941
    %v1321 = vadd.f32 %v1305, %v942
    %v1322 = vadd.f32 %v1306, %v943
    %1323 = vst [vmem:[#allocation8] sm:$0xff] %v1307
    %1324 = vst [vmem:[#allocation8 + $0x8] sm:$0xff] %v1308
    %1325 = vst [vmem:[#allocation8 + $0x10] sm:$0xff] %v1309
    %1326 = vst [vmem:[#allocation8 + $0x18] sm:$0xff] %v1310
    %1327 = vst [vmem:[#allocation8 + $0x20] sm:$0xff] %v1311
    %1328 = vst [vmem:[#allocation8 + $0x28] sm:$0xff] %v1312
    %1329 = vst [vmem:[#allocation8 + $0x30] sm:$0xff] %v1313
    %1330 = vst [vmem:[#allocation8 + $0x38] sm:$0xff] %v1314
    %1331 = vst [vmem:[#allocation8 + $0x40] sm:$0xff] %v1315
    %1332 = vst [vmem:[#allocation8 + $0x48] sm:$0xff] %v1316
    %1333 = vst [vmem:[#allocation8 + $0x50] sm:$0xff] %v1317
    %1334 = vst [vmem:[#allocation8 + $0x58] sm:$0xff] %v1318
    %1335 = vst [vmem:[#allocation8 + $0x60] sm:$0xff] %v1319
    %1336 = vst [vmem:[#allocation8 + $0x68] sm:$0xff] %v1320
    %1337 = vst [vmem:[#allocation8 + $0x70] sm:$0xff] %v1321
    %1338 = vst [vmem:[#allocation8 + $0x78] sm:$0xff] %v1322
    // Predicated region
    $region30: #{tpu_custom_call.1} parent=1 // pred_check
      _
    $region31: #{tpu_custom_call.1} parent=1 // pred_check_branch
      %1340 = sbr.rel (0) target = $region33
    $region32: #{tpu_custom_call.1} parent=1 // pred_region
      %s1342 = ssub.s32 2048, 2048
      %1343 = vsyncadd [#allocation4], %s1342
      %s1344 = sshll.u32 [#allocation8], 4
      %s1345 = int_to_ptr.vmem [resolvable:$true] %s1344
      %1350 = dma.vmem_to_hbm [thread:$0]  %s1345, 2048, %s4, [#allocation4], 128, 128, 8
    $region33: #{tpu_custom_call.1} parent=1 // pred_fallthru
      _
    // Predicated region
    $region34: #{tpu_custom_call.1} parent=1 // pred_check
      _
    $region35: #{tpu_custom_call.1} parent=1 // pred_check_branch
      %1352 = sbr.rel (0) target = $region37
    $region36: #{tpu_custom_call.1} parent=1 // pred_region
      %1353 = dma.done [#allocation4], 2048
    $region37: #{tpu_custom_call.1} parent=1 // pred_fallthru
      _
    %1354 = vsyncpa [#allocation3], 1
    %1355 = vsyncpa [#allocation6], 1
    %1356 = vsyncpa [#allocation4], 1

</llo_original>
